<compile_context>
chip_gen: v5e
topology: v5e:2x2
jax: 0.10.0
libtpu: 0.0.40
codegen_flags: <defaults>
</compile_context>

<pallas_src>
import jax
import jax.numpy as jnp
from jax.experimental import pallas as pl
from jax.experimental.pallas import tpu as pltpu


HIDDEN = 256          # fixed by the PyTorch module (nn.Linear(..., 256))
OUT_LANES = 128       # lane-dense padded output slab; lane0 = q1, lane1 = q2
MATMUL_DTYPE = jnp.bfloat16   # MXU operand dtype (accumulation stays f32)
TILE_CAP = 512        # max batch-tile rows (review: sweep 512-1024)
MIN_TILE = 8          # sublane alignment


def _round_up(x, m):
    return (x + m - 1) // m * m


def _cdiv(a, b):
    return -(-a // b)


def _choose_tile(batch, cap=TILE_CAP, min_tile=MIN_TILE):
    """Balanced batch tile: respect cap, minimize padding, grid>=2 when free."""
    n = max(1, _cdiv(batch, cap))
    # v7x megacore: prefer >= 2 grid steps when a second tile costs no extra
    # padding (each tile still >= min_tile real rows).  v5e/v6e unaffected.
    if n == 1 and batch >= 2 * min_tile:
        n = 2
    return _round_up(_cdiv(batch, n), min_tile)


def _critic_kernel(state_ref, z_ref,
                   w1s_ref, w1z_ref, b14_ref,
                   w2_ref, b2_ref, w5_ref, b5_ref,
                   w3_ref, w6_ref, b36_ref,
                   out_ref):
    """Whole forward pass (both Q heads) for one batch tile, fully in VMEM."""
    dt = w1s_ref.dtype
    s = state_ref[...].astype(dt)
    z = z_ref[...].astype(dt)

    # --- Layer 1 (l1 | l4 fused along N=512). K is split state/z, no concat.
    h = (jnp.dot(s, w1s_ref[...], preferred_element_type=jnp.float32)
         + jnp.dot(z, w1z_ref[...], preferred_element_type=jnp.float32)
         + b14_ref[...])
    h = jnp.maximum(h, 0.0).astype(dt)

    # --- Layer 2: two dense [tb,256]@[256,256] matmuls (no zero blocks).
    #     256-column slice is tile-aligned, so no copy is materialized.
    h1 = h[:, :HIDDEN]
    h2 = h[:, HIDDEN:]
    g1 = jnp.maximum(
        jnp.dot(h1, w2_ref[...], preferred_element_type=jnp.float32)
        + b2_ref[...], 0.0).astype(dt)
    g2 = jnp.maximum(
        jnp.dot(h2, w5_ref[...], preferred_element_type=jnp.float32)
        + b5_ref[...], 0.0).astype(dt)

    # --- Layer 3: split along K; q1 in lane 0, q2 in lane 1 of a lane-dense
    #     [tb,128] slab (unmasked stores).  b3/b6 folded into b36.
    out_ref[...] = (jnp.dot(g1, w3_ref[...], preferred_element_type=jnp.float32)
                    + jnp.dot(g2, w6_ref[...], preferred_element_type=jnp.float32)
                    + b36_ref[...])


def init_critic_params(key, state_dim, latent_dim):
    """nn.Linear-style init. Weights stored already transposed to [in, out]."""
    in_dim = state_dim + latent_dim
    sizes = [
        ("w1", "b1", in_dim, HIDDEN), ("w2", "b2", HIDDEN, HIDDEN),
        ("w3", "b3", HIDDEN, 1),
        ("w4", "b4", in_dim, HIDDEN), ("w5", "b5", HIDDEN, HIDDEN),
        ("w6", "b6", HIDDEN, 1),
    ]
    params = {}
    for wname, bname, fan_in, fan_out in sizes:
        key, kw, kb = jax.random.split(key, 3)
        bound = 1.0 / jnp.sqrt(jnp.float32(fan_in))
        params[wname] = jax.random.uniform(
            kw, (fan_in, fan_out), jnp.float32, minval=-bound, maxval=bound)
        params[bname] = jax.random.uniform(
            kb, (1, fan_out), jnp.float32, minval=-bound, maxval=bound)
    return params


def prepare_fused_params(params, state_dim, matmul_dtype=MATMUL_DTYPE):
    """Fuse/pad the six Linear layers into resident kernel weight blocks."""
    # Layer 1: fuse along N (l1 | l4), then split along K into state / z parts.
    w14 = jnp.concatenate([params["w1"], params["w4"]], axis=1)      # [in, 512]
    b14 = jnp.concatenate([params["b1"], params["b4"]], axis=1)      # [1, 512]
    # Layer 3: zero-padded to 128 lanes; q1 -> lane 0, q2 -> lane 1.
    w3p = jnp.zeros((HIDDEN, OUT_LANES), jnp.float32).at[:, 0:1].set(params["w3"])
    w6p = jnp.zeros((HIDDEN, OUT_LANES), jnp.float32).at[:, 1:2].set(params["w6"])
    b36 = jnp.zeros((1, OUT_LANES), jnp.float32)
    b36 = b36.at[:, 0:1].set(params["b3"]).at[:, 1:2].set(params["b6"])
    return {
        "w14_state": w14[:state_dim].astype(matmul_dtype),
        "w14_z": w14[state_dim:].astype(matmul_dtype),
        "b14": b14,
        "w2": params["w2"].astype(matmul_dtype), "b2": params["b2"],
        "w5": params["w5"].astype(matmul_dtype), "b5": params["b5"],
        "w3_pad": w3p.astype(matmul_dtype),
        "w6_pad": w6p.astype(matmul_dtype),
        "b36": b36,
    }


@jax.jit
def critic_forward(state, z, fused):
    """Returns (q1, q2), each [batch, 1] float32."""
    state = state.astype(jnp.float32)
    z = z.astype(jnp.float32)
    batch, sd = state.shape
    ld = z.shape[1]

    tb = _choose_tile(batch)
    b_pad = _round_up(batch, tb)
    if b_pad != batch:
        pad = ((0, b_pad - batch), (0, 0))
        state = jnp.pad(state, pad)
        z = jnp.pad(z, pad)
    grid = (b_pad // tb,)

    def batch_spec(cols):
        return pl.BlockSpec((tb, cols), lambda i: (i, 0))

    def resident_spec(arr):
        # Constant index_map: weight/bias stays resident across grid steps.
        return pl.BlockSpec(arr.shape, lambda i: (0, 0))

    in_dim = sd + ld
    flops = 2 * b_pad * (in_dim * 2 * HIDDEN           # layer 1 (fused heads)
                         + 2 * HIDDEN * HIDDEN         # layer 2 (two heads)
                         + 2 * HIDDEN * OUT_LANES)     # layer 3 (two heads)
    weight_bytes = sum(int(v.size) * v.dtype.itemsize for v in fused.values())
    bytes_accessed = (b_pad * in_dim * 4                # inputs
                      + b_pad * OUT_LANES * 4           # output slab
                      + weight_bytes)

    out = pl.pallas_call(
        _critic_kernel,
        out_shape=jax.ShapeDtypeStruct((b_pad, OUT_LANES), jnp.float32),
        grid=grid,
        in_specs=[
            batch_spec(sd),
            batch_spec(ld),
            resident_spec(fused["w14_state"]),
            resident_spec(fused["w14_z"]),
            resident_spec(fused["b14"]),
            resident_spec(fused["w2"]),
            resident_spec(fused["b2"]),
            resident_spec(fused["w5"]),
            resident_spec(fused["b5"]),
            resident_spec(fused["w3_pad"]),
            resident_spec(fused["w6_pad"]),
            resident_spec(fused["b36"]),
        ],
        out_specs=pl.BlockSpec((tb, OUT_LANES), lambda i: (i, 0)),
        compiler_params=pltpu.CompilerParams(
            dimension_semantics=("parallel",),
            vmem_limit_bytes=48 * 1024 * 1024),
        cost_estimate=pl.CostEstimate(
            flops=int(flops), transcendentals=0,
            bytes_accessed=int(bytes_accessed)),
    )(state, z,
      fused["w14_state"], fused["w14_z"], fused["b14"],
      fused["w2"], fused["b2"], fused["w5"], fused["b5"],
      fused["w3_pad"], fused["w6_pad"], fused["b36"])

    return out[:batch, 0:1], out[:batch, 1:2]


def reference_forward(state, z, params, matmul_dtype=jnp.float32):
    """Pure-JAX reference of the PyTorch forward (optionally bf16 MXU operands)."""
    def lin(a, w, b):
        return jnp.dot(a.astype(matmul_dtype), w.astype(matmul_dtype),
                       preferred_element_type=jnp.float32) + b
    x = jnp.concatenate([state, z], axis=1)
    h = jax.nn.relu(lin(x, params["w1"], params["b1"]))
    h = jax.nn.relu(lin(h, params["w2"], params["b2"]))
    q1 = lin(h, params["w3"], params["b3"])
    g = jax.nn.relu(lin(x, params["w4"], params["b4"]))
    g = jax.nn.relu(lin(g, params["w5"], params["b5"]))
    q2 = lin(g, params["w6"], params["b6"])
    return q1, q2


if __name__ == "__main__":
    key = jax.random.PRNGKey(0)
    batch, state_dim, latent_dim = 2, 12, 4

    k_params, k_state, k_z = jax.random.split(key, 3)
    params = init_critic_params(k_params, state_dim, latent_dim)
    fused = prepare_fused_params(params, state_dim)

    state = jax.random.normal(k_state, (batch, state_dim), jnp.float32)
    # z is None in PyTorch -> randn clamped to [-0.5, 0.5]; drawn in the wrapper.
    z = jnp.clip(jax.random.normal(k_z, (batch, latent_dim), jnp.float32),
                 -0.5, 0.5)

    q1, q2 = critic_forward(state, z, fused)
    jax.block_until_ready((q1, q2))
    assert q1.shape == (batch, 1) and q2.shape == (batch, 1)

    # Tight check against a reference using the same bf16 MXU operand dtype.
    q1_bf, q2_bf = reference_forward(state, z, params, MATMUL_DTYPE)
    assert jnp.allclose(q1, q1_bf, atol=2e-3, rtol=2e-3)
    assert jnp.allclose(q2, q2_bf, atol=2e-3, rtol=2e-3)

    # Loose check against the exact f32 PyTorch-equivalent math.
    q1_f32, q2_f32 = reference_forward(state, z, params, jnp.float32)
    assert jnp.allclose(q1, q1_f32, atol=5e-2, rtol=5e-2)
    assert jnp.allclose(q2, q2_f32, atol=5e-2, rtol=5e-2)

    # Exercise a larger, non-tile-multiple batch to cover the adaptive tiling
    # (grid >= 2, balanced tiles, padded rows sliced off).
    kb_s, kb_z = jax.random.split(jax.random.PRNGKey(1))
    big_state = jax.random.normal(kb_s, (300, state_dim), jnp.float32)
    big_z = jnp.clip(jax.random.normal(kb_z, (300, latent_dim), jnp.float32),
                     -0.5, 0.5)
    bq1, bq2 = critic_forward(big_state, big_z, fused)
    jax.block_until_ready((bq1, bq2))
    rq1, rq2 = reference_forward(big_state, big_z, params, MATMUL_DTYPE)
    assert bq1.shape == (300, 1) and bq2.shape == (300, 1)
    assert jnp.allclose(bq1, rq1, atol=2e-3, rtol=2e-3)
    assert jnp.allclose(bq2, rq2, atol=2e-3, rtol=2e-3)

    print("KERNEL_OK")
</pallas_src>

<mosaic_0001>
module attributes {stable_mosaic.version = 11 : i64} {
  func.func @_critic_kernel(%arg0: i32, %arg1: memref<8x12xf32, #tpu.memory_space<vmem>>, %arg2: memref<8x4xf32, #tpu.memory_space<vmem>>, %arg3: memref<12x512xbf16, #tpu.memory_space<vmem>>, %arg4: memref<4x512xbf16, #tpu.memory_space<vmem>>, %arg5: memref<1x512xf32, #tpu.memory_space<vmem>>, %arg6: memref<256x256xbf16, #tpu.memory_space<vmem>>, %arg7: memref<1x256xf32, #tpu.memory_space<vmem>>, %arg8: memref<256x256xbf16, #tpu.memory_space<vmem>>, %arg9: memref<1x256xf32, #tpu.memory_space<vmem>>, %arg10: memref<256x128xbf16, #tpu.memory_space<vmem>>, %arg11: memref<256x128xbf16, #tpu.memory_space<vmem>>, %arg12: memref<1x128xf32, #tpu.memory_space<vmem>>, %arg13: memref<8x128xf32, #tpu.memory_space<vmem>>) attributes {dimension_semantics = [#tpu.dimension_semantics<parallel>], iteration_bounds = array<i64: 1>, scalar_prefetch = 0 : i64, scratch_operands = 0 : i64, tpu.core_type = #tpu.core_type<tc>, window_params = [{transform_indices = @transform_0, window_bounds = array<i64: 8, 12>}, {transform_indices = @transform_1, window_bounds = array<i64: 8, 4>}, {pipeline_mode = #tpu.pipeline_mode<synchronous>, transform_indices = @transform_2, window_bounds = array<i64: 12, 512>}, {pipeline_mode = #tpu.pipeline_mode<synchronous>, transform_indices = @transform_3, window_bounds = array<i64: 4, 512>}, {pipeline_mode = #tpu.pipeline_mode<synchronous>, transform_indices = @transform_4, window_bounds = array<i64: 1, 512>}, {pipeline_mode = #tpu.pipeline_mode<synchronous>, transform_indices = @transform_5, window_bounds = array<i64: 256, 256>}, {pipeline_mode = #tpu.pipeline_mode<synchronous>, transform_indices = @transform_6, window_bounds = array<i64: 1, 256>}, {pipeline_mode = #tpu.pipeline_mode<synchronous>, transform_indices = @transform_7, window_bounds = array<i64: 256, 256>}, {pipeline_mode = #tpu.pipeline_mode<synchronous>, transform_indices = @transform_8, window_bounds = array<i64: 1, 256>}, {pipeline_mode = #tpu.pipeline_mode<synchronous>, transform_indices = @transform_9, window_bounds = array<i64: 256, 128>}, {pipeline_mode = #tpu.pipeline_mode<synchronous>, transform_indices = @transform_10, window_bounds = array<i64: 256, 128>}, {pipeline_mode = #tpu.pipeline_mode<synchronous>, transform_indices = @transform_11, window_bounds = array<i64: 1, 128>}, {transform_indices = @transform_12, window_bounds = array<i64: 8, 128>}]} {
    %c0 = arith.constant 0 : index
    %c0_0 = arith.constant 0 : index
    %0 = vector.load %arg1[%c0, %c0_0] : memref<8x12xf32, #tpu.memory_space<vmem>>, vector<8x12xf32>
    %1 = arith.truncf %0 : vector<8x12xf32> to vector<8x12xbf16>
    %c0_1 = arith.constant 0 : index
    %c0_2 = arith.constant 0 : index
    %2 = vector.load %arg2[%c0_1, %c0_2] : memref<8x4xf32, #tpu.memory_space<vmem>>, vector<8x4xf32>
    %3 = arith.truncf %2 : vector<8x4xf32> to vector<8x4xbf16>
    %c0_3 = arith.constant 0 : index
    %c0_4 = arith.constant 0 : index
    %4 = vector.load %arg3[%c0_3, %c0_4] : memref<12x512xbf16, #tpu.memory_space<vmem>>, vector<12x512xbf16>
    %cst = arith.constant dense<0.000000e+00> : vector<8x512xf32>
    %5 = tpu.matmul %1, %4, %cst {dimension_numbers = #tpu.dot_dimension_numbers<[1], [0], [0], [1], [0, 0, 1, 1], [], []>} : vector<8x12xbf16>, vector<12x512xbf16>, vector<8x512xf32> -> vector<8x512xf32>
    %c0_5 = arith.constant 0 : index
    %c0_6 = arith.constant 0 : index
    %6 = vector.load %arg4[%c0_5, %c0_6] : memref<4x512xbf16, #tpu.memory_space<vmem>>, vector<4x512xbf16>
    %cst_7 = arith.constant dense<0.000000e+00> : vector<8x512xf32>
    %7 = tpu.matmul %3, %6, %cst_7 {dimension_numbers = #tpu.dot_dimension_numbers<[1], [0], [0], [1], [0, 0, 1, 1], [], []>} : vector<8x4xbf16>, vector<4x512xbf16>, vector<8x512xf32> -> vector<8x512xf32>
    %8 = arith.addf %5, %7 : vector<8x512xf32>
    %c0_8 = arith.constant 0 : index
    %c0_9 = arith.constant 0 : index
    %9 = vector.load %arg5[%c0_8, %c0_9] : memref<1x512xf32, #tpu.memory_space<vmem>>, vector<1x512xf32>
    %10 = vector.broadcast %9 : vector<1x512xf32> to vector<8x512xf32>
    %11 = arith.addf %8, %10 : vector<8x512xf32>
    %cst_10 = arith.constant 0.000000e+00 : f32
    %12 = vector.broadcast %cst_10 : f32 to vector<8x512xf32>
    %13 = arith.maximumf %11, %12 : vector<8x512xf32>
    %14 = arith.truncf %13 : vector<8x512xf32> to vector<8x512xbf16>
    %15 = vector.extract_strided_slice %14 {offsets = [0, 0], sizes = [8, 256], strides = [1, 1]} : vector<8x512xbf16> to vector<8x256xbf16>
    %16 = vector.extract_strided_slice %14 {offsets = [0, 256], sizes = [8, 256], strides = [1, 1]} : vector<8x512xbf16> to vector<8x256xbf16>
    %c0_11 = arith.constant 0 : index
    %c0_12 = arith.constant 0 : index
    %17 = vector.load %arg6[%c0_11, %c0_12] : memref<256x256xbf16, #tpu.memory_space<vmem>>, vector<256x256xbf16>
    %cst_13 = arith.constant dense<0.000000e+00> : vector<8x256xf32>
    %18 = tpu.matmul %15, %17, %cst_13 {dimension_numbers = #tpu.dot_dimension_numbers<[1], [0], [0], [1], [0, 0, 1, 1], [], []>} : vector<8x256xbf16>, vector<256x256xbf16>, vector<8x256xf32> -> vector<8x256xf32>
    %c0_14 = arith.constant 0 : index
    %c0_15 = arith.constant 0 : index
    %19 = vector.load %arg7[%c0_14, %c0_15] : memref<1x256xf32, #tpu.memory_space<vmem>>, vector<1x256xf32>
    %20 = vector.broadcast %19 : vector<1x256xf32> to vector<8x256xf32>
    %21 = arith.addf %18, %20 : vector<8x256xf32>
    %cst_16 = arith.constant 0.000000e+00 : f32
    %22 = vector.broadcast %cst_16 : f32 to vector<8x256xf32>
    %23 = arith.maximumf %21, %22 : vector<8x256xf32>
    %24 = arith.truncf %23 : vector<8x256xf32> to vector<8x256xbf16>
    %c0_17 = arith.constant 0 : index
    %c0_18 = arith.constant 0 : index
    %25 = vector.load %arg8[%c0_17, %c0_18] : memref<256x256xbf16, #tpu.memory_space<vmem>>, vector<256x256xbf16>
    %cst_19 = arith.constant dense<0.000000e+00> : vector<8x256xf32>
    %26 = tpu.matmul %16, %25, %cst_19 {dimension_numbers = #tpu.dot_dimension_numbers<[1], [0], [0], [1], [0, 0, 1, 1], [], []>} : vector<8x256xbf16>, vector<256x256xbf16>, vector<8x256xf32> -> vector<8x256xf32>
    %c0_20 = arith.constant 0 : index
    %c0_21 = arith.constant 0 : index
    %27 = vector.load %arg9[%c0_20, %c0_21] : memref<1x256xf32, #tpu.memory_space<vmem>>, vector<1x256xf32>
    %28 = vector.broadcast %27 : vector<1x256xf32> to vector<8x256xf32>
    %29 = arith.addf %26, %28 : vector<8x256xf32>
    %cst_22 = arith.constant 0.000000e+00 : f32
    %30 = vector.broadcast %cst_22 : f32 to vector<8x256xf32>
    %31 = arith.maximumf %29, %30 : vector<8x256xf32>
    %32 = arith.truncf %31 : vector<8x256xf32> to vector<8x256xbf16>
    %c0_23 = arith.constant 0 : index
    %c0_24 = arith.constant 0 : index
    %33 = vector.load %arg10[%c0_23, %c0_24] : memref<256x128xbf16, #tpu.memory_space<vmem>>, vector<256x128xbf16>
    %cst_25 = arith.constant dense<0.000000e+00> : vector<8x128xf32>
    %34 = tpu.matmul %24, %33, %cst_25 {dimension_numbers = #tpu.dot_dimension_numbers<[1], [0], [0], [1], [0, 0, 1, 1], [], []>} : vector<8x256xbf16>, vector<256x128xbf16>, vector<8x128xf32> -> vector<8x128xf32>
    %c0_26 = arith.constant 0 : index
    %c0_27 = arith.constant 0 : index
    %35 = vector.load %arg11[%c0_26, %c0_27] : memref<256x128xbf16, #tpu.memory_space<vmem>>, vector<256x128xbf16>
    %cst_28 = arith.constant dense<0.000000e+00> : vector<8x128xf32>
    %36 = tpu.matmul %32, %35, %cst_28 {dimension_numbers = #tpu.dot_dimension_numbers<[1], [0], [0], [1], [0, 0, 1, 1], [], []>} : vector<8x256xbf16>, vector<256x128xbf16>, vector<8x128xf32> -> vector<8x128xf32>
    %37 = arith.addf %34, %36 : vector<8x128xf32>
    %c0_29 = arith.constant 0 : index
    %c0_30 = arith.constant 0 : index
    %38 = vector.load %arg12[%c0_29, %c0_30] : memref<1x128xf32, #tpu.memory_space<vmem>>, vector<1x128xf32>
    %39 = vector.broadcast %38 : vector<1x128xf32> to vector<8x128xf32>
    %40 = arith.addf %37, %39 : vector<8x128xf32>
    %c0_31 = arith.constant 0 : index
    %c0_32 = arith.constant 0 : index
    %41 = vector.load %arg13[%c0_31, %c0_32] : memref<8x128xf32, #tpu.memory_space<vmem>>, vector<8x128xf32>
    tpu.vector_store %arg13[%c0_31, %c0_32], %40 {strides = array<i32>} : memref<8x128xf32, #tpu.memory_space<vmem>>, vector<8x128xf32>,
    return
  }
  func.func @transform_0(%arg0: i32) -> (i32, i32) {
    %c0_i32 = arith.constant 0 : i32
    %c0_i32_0 = arith.constant 0 : i32
    return %arg0, %c0_i32 : i32, i32
  }
  func.func @transform_1(%arg0: i32) -> (i32, i32) {
    %c0_i32 = arith.constant 0 : i32
    %c0_i32_0 = arith.constant 0 : i32
    return %arg0, %c0_i32 : i32, i32
  }
  func.func @transform_2(%arg0: i32) -> (i32, i32) {
    %c0_i32 = arith.constant 0 : i32
    %c0_i32_0 = arith.constant 0 : i32
    %c0_i32_1 = arith.constant 0 : i32
    return %c0_i32, %c0_i32_0 : i32, i32
  }
  func.func @transform_3(%arg0: i32) -> (i32, i32) {
    %c0_i32 = arith.constant 0 : i32
    %c0_i32_0 = arith.constant 0 : i32
    %c0_i32_1 = arith.constant 0 : i32
    return %c0_i32, %c0_i32_0 : i32, i32
  }
  func.func @transform_4(%arg0: i32) -> (i32, i32) {
    %c0_i32 = arith.constant 0 : i32
    %c0_i32_0 = arith.constant 0 : i32
    %c0_i32_1 = arith.constant 0 : i32
    return %c0_i32, %c0_i32_0 : i32, i32
  }
  func.func @transform_5(%arg0: i32) -> (i32, i32) {
    %c0_i32 = arith.constant 0 : i32
    %c0_i32_0 = arith.constant 0 : i32
    %c0_i32_1 = arith.constant 0 : i32
    return %c0_i32, %c0_i32_0 : i32, i32
  }
  func.func @transform_6(%arg0: i32) -> (i32, i32) {
    %c0_i32 = arith.constant 0 : i32
    %c0_i32_0 = arith.constant 0 : i32
    %c0_i32_1 = arith.constant 0 : i32
    return %c0_i32, %c0_i32_0 : i32, i32
  }
  func.func @transform_7(%arg0: i32) -> (i32, i32) {
    %c0_i32 = arith.constant 0 : i32
    %c0_i32_0 = arith.constant 0 : i32
    %c0_i32_1 = arith.constant 0 : i32
    return %c0_i32, %c0_i32_0 : i32, i32
  }
  func.func @transform_8(%arg0: i32) -> (i32, i32) {
    %c0_i32 = arith.constant 0 : i32
    %c0_i32_0 = arith.constant 0 : i32
    %c0_i32_1 = arith.constant 0 : i32
    return %c0_i32, %c0_i32_0 : i32, i32
  }
  func.func @transform_9(%arg0: i32) -> (i32, i32) {
    %c0_i32 = arith.constant 0 : i32
    %c0_i32_0 = arith.constant 0 : i32
    %c0_i32_1 = arith.constant 0 : i32
    return %c0_i32, %c0_i32_0 : i32, i32
  }
  func.func @transform_10(%arg0: i32) -> (i32, i32) {
    %c0_i32 = arith.constant 0 : i32
    %c0_i32_0 = arith.constant 0 : i32
    %c0_i32_1 = arith.constant 0 : i32
    return %c0_i32, %c0_i32_0 : i32, i32
  }
  func.func @transform_11(%arg0: i32) -> (i32, i32) {
    %c0_i32 = arith.constant 0 : i32
    %c0_i32_0 = arith.constant 0 : i32
    %c0_i32_1 = arith.constant 0 : i32
    return %c0_i32, %c0_i32_0 : i32, i32
  }
  func.func @transform_12(%arg0: i32) -> (i32, i32) {
    %c0_i32 = arith.constant 0 : i32
    %c0_i32_0 = arith.constant 0 : i32
    return %arg0, %c0_i32 : i32, i32
  }
}

</mosaic_0001>

<llo_original>
// kernel: critic_forward.1
$region0: #{critic_forward.1}
  #allocation0 [shape = 'u32[]', space=smem, size = 0x4, offset = 0x4, fixed_abs, tag = 'smem constant byte address 0x4 - core index']
  #allocation1 [shape = 'u32[72,128]{1,0:T(1,128)}', space=vmem, size = 0x9000, scoped, tag = 'internal scratch']
  %s0 = inlined_call_operand.vmem [shape: f32[8,12], index: 0, kind: input, shape index: {}]
  %s1 = inlined_call_operand.vmem [shape: f32[8,4], index: 1, kind: input, shape index: {}]
  %s2 = inlined_call_operand.hbm [shape: bf16[12,512], index: 2, kind: input, shape index: {}]
  %s3 = inlined_call_operand.vmem [shape: bf16[4,512], index: 3, kind: input, shape index: {}]
  %s4 = inlined_call_operand.vmem [shape: f32[1,512], index: 4, kind: input, shape index: {}]
  %s5 = inlined_call_operand.hbm [shape: bf16[256,256], index: 5, kind: input, shape index: {}]
  %s6 = inlined_call_operand.vmem [shape: f32[1,256], index: 6, kind: input, shape index: {}]
  %s7 = inlined_call_operand.hbm [shape: bf16[256,256], index: 7, kind: input, shape index: {}]
  %s8 = inlined_call_operand.vmem [shape: f32[1,256], index: 8, kind: input, shape index: {}]
  %s9 = inlined_call_operand.hbm [shape: bf16[256,128], index: 9, kind: input, shape index: {}]
  %s10 = inlined_call_operand.hbm [shape: bf16[256,128], index: 10, kind: input, shape index: {}]
  %s11 = inlined_call_operand.vmem [shape: f32[1,128], index: 11, kind: input, shape index: {}]
  %s12 = inlined_call_operand.vmem [shape: f32[8,128], index: 12, kind: output, shape index: {}]
  %s13 = sld [smem:[#allocation0]]
  $region78: #{critic_forward.1} parent=0
    _
  %s15 = ssub.s32 1, %s13
  %s16 = scalar_select 0, %s15, %s13
  $region1: #{critic_forward.1} parent=0
    #allocation2 [shape = 'u8[16384]{0}', space=vmem, size = 0x4000, scoped, tag = 'input window, operand 2, single buffered']
    #allocation3 [shape = 's32[1]{0}', space=sflag, size = 0x4, scoped, tag = 'scoped memory for critic_forward.1']
    #allocation4 [shape = 'u8[131072]{0}', space=vmem, size = 0x20000, scoped, tag = 'input window, operand 5, single buffered']
    #allocation5 [shape = 's32[1]{0}', space=sflag, size = 0x4, scoped, tag = 'scoped memory for critic_forward.1']
    #allocation6 [shape = 'u8[131072]{0}', space=vmem, size = 0x20000, scoped, tag = 'input window, operand 7, single buffered']
    #allocation7 [shape = 'u8[65536]{0}', space=vmem, size = 0x10000, scoped, tag = 'input window, operand 9, single buffered']
    #allocation8 [shape = 's32[1]{0}', space=sflag, size = 0x4, scoped, tag = 'scoped memory for critic_forward.1']
    #allocation9 [shape = 'u8[65536]{0}', space=vmem, size = 0x10000, scoped, tag = 'input window, operand 10, single buffered']
    %17 = vsyncpa [#allocation3], 0
    %18 = vsyncpa [#allocation5], 0
    %19 = vsyncpa [#allocation8], 0
    // Predicated region
    $region2: #{critic_forward.1} parent=1 // pred_check
      _
    $region3: #{critic_forward.1} parent=1 // pred_check_branch
      %21 = sbr.rel (0) target = $region5
    $region4: #{critic_forward.1} parent=1 // pred_region
      _
    $region5: #{critic_forward.1} parent=1 // pred_fallthru
      _
    // Predicated region
    $region6: #{critic_forward.1} parent=1 // pred_check
      _
    $region7: #{critic_forward.1} parent=1 // pred_check_branch
      %23 = sbr.rel (0) target = $region9
    $region8: #{critic_forward.1} parent=1 // pred_region
      _
    $region9: #{critic_forward.1} parent=1 // pred_fallthru
      _
    // Predicated region
    $region10: #{critic_forward.1} parent=1 // pred_check
      _
    $region11: #{critic_forward.1} parent=1 // pred_check_branch
      %25 = sbr.rel (0) target = $region13
    $region12: #{critic_forward.1} parent=1 // pred_region
      %27 = vsyncadd [#allocation3], 0
      %s28 = sshll.u32 %s2, 4
      %s29 = int_to_ptr.hbm [resolvable:$true] %s28
      %s30 = sshll.u32 [#allocation2], 4
      %s31 = int_to_ptr.vmem [resolvable:$true] %s30
      %36 = dma.hbm_to_vmem [thread:$0]  %s29, 512, %s31, [#allocation3], 256, 256, 16
    $region13: #{critic_forward.1} parent=1 // pred_fallthru
      _
    // Predicated region
    $region14: #{critic_forward.1} parent=1 // pred_check
      _
    $region15: #{critic_forward.1} parent=1 // pred_check_branch
      %38 = sbr.rel (0) target = $region17
    $region16: #{critic_forward.1} parent=1 // pred_region
      _
    $region17: #{critic_forward.1} parent=1 // pred_fallthru
      _
    // Predicated region
    $region18: #{critic_forward.1} parent=1 // pred_check
      _
    $region19: #{critic_forward.1} parent=1 // pred_check_branch
      %40 = sbr.rel (0) target = $region21
    $region20: #{critic_forward.1} parent=1 // pred_region
      _
    $region21: #{critic_forward.1} parent=1 // pred_fallthru
      _
    // Predicated region
    $region22: #{critic_forward.1} parent=1 // pred_check
      _
    $region23: #{critic_forward.1} parent=1 // pred_check_branch
      %42 = sbr.rel (0) target = $region25
    $region24: #{critic_forward.1} parent=1 // pred_region
      %44 = vsyncadd [#allocation5], 0
      %s45 = sshll.u32 %s5, 4
      %s46 = int_to_ptr.hbm [resolvable:$true] %s45
      %s47 = sshll.u32 [#allocation4], 4
      %s48 = int_to_ptr.vmem [resolvable:$true] %s47
      %53 = dma.hbm_to_vmem [thread:$0]  %s46, 4096, %s48, [#allocation5], 128, 128, 8
    $region25: #{critic_forward.1} parent=1 // pred_fallthru
      _
    // Predicated region
    $region26: #{critic_forward.1} parent=1 // pred_check
      _
    $region27: #{critic_forward.1} parent=1 // pred_check_branch
      %55 = sbr.rel (0) target = $region29
    $region28: #{critic_forward.1} parent=1 // pred_region
      _
    $region29: #{critic_forward.1} parent=1 // pred_fallthru
      _
    // Predicated region
    $region30: #{critic_forward.1} parent=1 // pred_check
      _
    $region31: #{critic_forward.1} parent=1 // pred_check_branch
      %57 = sbr.rel (0) target = $region33
    $region32: #{critic_forward.1} parent=1 // pred_region
      %59 = vsyncadd [#allocation5], 0
      %s60 = sshll.u32 %s7, 4
      %s61 = int_to_ptr.hbm [resolvable:$true] %s60
      %s62 = sshll.u32 [#allocation6], 4
      %s63 = int_to_ptr.vmem [resolvable:$true] %s62
      %68 = dma.hbm_to_vmem [thread:$0]  %s61, 4096, %s63, [#allocation5], 128, 128, 8
    $region33: #{critic_forward.1} parent=1 // pred_fallthru
      _
    // Predicated region
    $region34: #{critic_forward.1} parent=1 // pred_check
      _
    $region35: #{critic_forward.1} parent=1 // pred_check_branch
      %70 = sbr.rel (0) target = $region37
    $region36: #{critic_forward.1} parent=1 // pred_region
      _
    $region37: #{critic_forward.1} parent=1 // pred_fallthru
      _
    // Predicated region
    $region38: #{critic_forward.1} parent=1 // pred_check
      _
    $region39: #{critic_forward.1} parent=1 // pred_check_branch
      %72 = sbr.rel (0) target = $region41
    $region40: #{critic_forward.1} parent=1 // pred_region
      %74 = vsyncadd [#allocation8], 0
      %s75 = sshll.u32 %s9, 4
      %s76 = int_to_ptr.hbm [resolvable:$true] %s75
      %s77 = sshll.u32 [#allocation7], 4
      %s78 = int_to_ptr.vmem [resolvable:$true] %s77
      %83 = dma.hbm_to_vmem [thread:$0]  %s76, 2048, %s78, [#allocation8], 64, 64, 4
    $region41: #{critic_forward.1} parent=1 // pred_fallthru
      _
    // Predicated region
    $region42: #{critic_forward.1} parent=1 // pred_check
      _
    $region43: #{critic_forward.1} parent=1 // pred_check_branch
      %85 = sbr.rel (0) target = $region45
    $region44: #{critic_forward.1} parent=1 // pred_region
      %87 = vsyncadd [#allocation8], 0
      %s88 = sshll.u32 %s10, 4
      %s89 = int_to_ptr.hbm [resolvable:$true] %s88
      %s90 = sshll.u32 [#allocation9], 4
      %s91 = int_to_ptr.vmem [resolvable:$true] %s90
      %96 = dma.hbm_to_vmem [thread:$0]  %s89, 2048, %s91, [#allocation8], 64, 64, 4
    $region45: #{critic_forward.1} parent=1 // pred_fallthru
      _
    // Predicated region
    $region46: #{critic_forward.1} parent=1 // pred_check
      _
    $region47: #{critic_forward.1} parent=1 // pred_check_branch
      %98 = sbr.rel (0) target = $region49
    $region48: #{critic_forward.1} parent=1 // pred_region
      _
    $region49: #{critic_forward.1} parent=1 // pred_fallthru
      _
    // Predicated region
    $region50: #{critic_forward.1} parent=1 // pred_check
      _
    $region51: #{critic_forward.1} parent=1 // pred_check_branch
      %100 = sbr.rel (0) target = $region53
    $region52: #{critic_forward.1} parent=1 // pred_region
      %102 = dma.done [#allocation3], 512
    $region53: #{critic_forward.1} parent=1 // pred_fallthru
      _
    // Predicated region
    $region54: #{critic_forward.1} parent=1 // pred_check
      _
    $region55: #{critic_forward.1} parent=1 // pred_check_branch
      %104 = sbr.rel (0) target = $region57
    $region56: #{critic_forward.1} parent=1 // pred_region
      %106 = dma.done [#allocation5], 4096
    $region57: #{critic_forward.1} parent=1 // pred_fallthru
      _
    // Predicated region
    $region58: #{critic_forward.1} parent=1 // pred_check
      _
    $region59: #{critic_forward.1} parent=1 // pred_check_branch
      %108 = sbr.rel (0) target = $region61
    $region60: #{critic_forward.1} parent=1 // pred_region
      %110 = dma.done [#allocation5], 4096
    $region61: #{critic_forward.1} parent=1 // pred_fallthru
      _
    // Predicated region
    $region62: #{critic_forward.1} parent=1 // pred_check
      _
    $region63: #{critic_forward.1} parent=1 // pred_check_branch
      %112 = sbr.rel (0) target = $region65
    $region64: #{critic_forward.1} parent=1 // pred_region
      %114 = dma.done [#allocation8], 2048
    $region65: #{critic_forward.1} parent=1 // pred_fallthru
      _
    // Predicated region
    $region66: #{critic_forward.1} parent=1 // pred_check
      _
    $region67: #{critic_forward.1} parent=1 // pred_check_branch
      %116 = sbr.rel (0) target = $region69
    $region68: #{critic_forward.1} parent=1 // pred_region
      %118 = dma.done [#allocation8], 2048
    $region69: #{critic_forward.1} parent=1 // pred_fallthru
      _
    %v120 = vld [vmem:[%s0] sm:$0xff]
    %v121 = vpack.c.bf16 %v120, %v120
    %v122 = vld [vmem:[%s1] sm:$0xff]
    %v123 = vpack.c.bf16 %v122, %v122
    %v124 = vld [vmem:[#allocation2] sm:$0xff]
    %v125 = vld [vmem:[#allocation2 + $0x8] sm:$0xff]
    %v126 = vld [vmem:[#allocation2 + $0x10] sm:$0x33]
    %v127 = vld [vmem:[#allocation2 + $0x18] sm:$0x33]
    %v128 = vld [vmem:[%s3] sm:$0xff]
    %130 = vst [vmem:[#allocation1] ss:$4 sm:$0xff] %v128
    %v131 = vld.sshfl [vmem:[#allocation1] sm:$0xff pattern:$0x73625140]
    %v132 = vld.sshfl [vmem:[#allocation1 + $0x8] sm:$0xff pattern:$0x73625140]
    %v133 = vld.sshfl [vmem:[#allocation1 + $0x10] sm:$0xff pattern:$0x73625140]
    %v134 = vld.sshfl [vmem:[#allocation1 + $0x18] sm:$0xff pattern:$0x73625140]
    %vm135 = vcmask 31744
    %v137 = vsel %vm135, %v123, 0
    %vm139 = vcmask 1041408
    %v140 = vsel %vm139, %v131, 0
    %v142 = vsel %vm139, %v132, 0
    %v144 = vsel %vm139, %v133, 0
    %v146 = vsel %vm139, %v134, 0
    %148 = vmatpush.bf16.msra.mxu0 0
    %149 = vmatpush.bf16.msra.mxu0 0
    %150 = vmatpush.bf16.msra.mxu0 0
    %151 = vmatpush.bf16.msra.mxu0 0
    %152 = vmatpush.bf16.msra.mxu0 0
    %153 = vmatpush.bf16.msra.mxu0 0
    %154 = vmatpush.bf16.msra.mxu0 0
    %155 = vmatpush.bf16.msra.mxu0 %v140
    %156 = vmatmul.bf16.gmra.mxu0 %v137
    %v157 = vpop.f32.mrf.mxu0
    %v158 = vadd.f32 0.0, %v157
    %v159 = vpop.f32.mrf.mxu0
    %160 = vdwg.mxu0
    %161 = vmatpush.bf16.msra.mxu0 0
    %162 = vmatpush.bf16.msra.mxu0 0
    %163 = vmatpush.bf16.msra.mxu0 0
    %164 = vmatpush.bf16.msra.mxu0 0
    %165 = vmatpush.bf16.msra.mxu0 0
    %166 = vmatpush.bf16.msra.mxu0 0
    %167 = vmatpush.bf16.msra.mxu0 0
    %168 = vmatpush.bf16.msra.mxu0 %v142
    %169 = vmatmul.bf16.gmra.mxu0 %v137
    %v170 = vpop.f32.mrf.mxu0
    %v171 = vadd.f32 0.0, %v170
    %v172 = vpop.f32.mrf.mxu0
    %173 = vdwg.mxu0
    %174 = vmatpush.bf16.msra.mxu0 0
    %175 = vmatpush.bf16.msra.mxu0 0
    %176 = vmatpush.bf16.msra.mxu0 0
    %177 = vmatpush.bf16.msra.mxu0 0
    %178 = vmatpush.bf16.msra.mxu0 0
    %179 = vmatpush.bf16.msra.mxu0 0
    %180 = vmatpush.bf16.msra.mxu0 0
    %181 = vmatpush.bf16.msra.mxu0 %v144
    %182 = vmatmul.bf16.gmra.mxu0 %v137
    %v183 = vpop.f32.mrf.mxu0
    %v184 = vadd.f32 0.0, %v183
    %v185 = vpop.f32.mrf.mxu0
    %186 = vdwg.mxu0
    %187 = vmatpush.bf16.msra.mxu0 0
    %188 = vmatpush.bf16.msra.mxu0 0
    %189 = vmatpush.bf16.msra.mxu0 0
    %190 = vmatpush.bf16.msra.mxu0 0
    %191 = vmatpush.bf16.msra.mxu0 0
    %192 = vmatpush.bf16.msra.mxu0 0
    %193 = vmatpush.bf16.msra.mxu0 0
    %194 = vmatpush.bf16.msra.mxu0 %v146
    %195 = vmatmul.bf16.gmra.mxu0 %v137
    %v196 = vpop.f32.mrf.mxu0
    %v197 = vadd.f32 0.0, %v196
    %v198 = vpop.f32.mrf.mxu0
    %199 = vdwg.mxu0
    %v204 = vunpack.c.l.b16 %v124
    %v205 = vunpack.c.h.b16 %v124
    %v206 = vunpack.c.l.b16 %v125
    %v207 = vunpack.c.h.b16 %v125
    %v208 = vunpack.c.l.b16 %v126
    %v209 = vunpack.c.h.b16 %v126
    %v210 = vunpack.c.l.b16 %v127
    %v211 = vunpack.c.h.b16 %v127
    %v212 = vpack.c.b16 %v208, %v204
    %v213 = vpack.c.b16 %v209, %v205
    %v214 = vpack.c.b16 %v210, %v206
    %v215 = vpack.c.b16 %v211, %v207
    %vm216 = vcmask 97280
    %v218 = vsel %vm216, %v121, 0
    %vm220 = vcmask 1045504
    %v222 = vsel %vm220, %v212, 0
    %v225 = vsel %vm220, %v213, 0
    %v228 = vsel %vm220, %v214, 0
    %v231 = vsel %vm220, %v215, 0
    %233 = vmatpush.bf16.msra.mxu0 0
    %234 = vmatpush.bf16.msra.mxu0 0
    %235 = vmatpush.bf16.msra.mxu0 0
    %236 = vmatpush.bf16.msra.mxu0 0
    %237 = vmatpush.bf16.msra.mxu0 0
    %238 = vmatpush.bf16.msra.mxu0 0
    %239 = vmatpush.bf16.msra.mxu0 0
    %240 = vmatpush.bf16.msra.mxu0 %v222
    %241 = vmatmul.bf16.gmra.mxu0 %v218
    %v242 = vpop.f32.mrf.mxu0
    %v243 = vadd.f32 %v158, %v242
    %v244 = vpop.f32.mrf.mxu0
    %245 = vdwg.mxu0
    %246 = vmatpush.bf16.msra.mxu0 0
    %247 = vmatpush.bf16.msra.mxu0 0
    %248 = vmatpush.bf16.msra.mxu0 0
    %249 = vmatpush.bf16.msra.mxu0 0
    %250 = vmatpush.bf16.msra.mxu0 0
    %251 = vmatpush.bf16.msra.mxu0 0
    %252 = vmatpush.bf16.msra.mxu0 0
    %253 = vmatpush.bf16.msra.mxu0 %v225
    %254 = vmatmul.bf16.gmra.mxu0 %v218
    %v255 = vpop.f32.mrf.mxu0
    %v256 = vadd.f32 %v171, %v255
    %v257 = vpop.f32.mrf.mxu0
    %258 = vdwg.mxu0
    %259 = vmatpush.bf16.msra.mxu0 0
    %260 = vmatpush.bf16.msra.mxu0 0
    %261 = vmatpush.bf16.msra.mxu0 0
    %262 = vmatpush.bf16.msra.mxu0 0
    %263 = vmatpush.bf16.msra.mxu0 0
    %264 = vmatpush.bf16.msra.mxu0 0
    %265 = vmatpush.bf16.msra.mxu0 0
    %266 = vmatpush.bf16.msra.mxu0 %v228
    %267 = vmatmul.bf16.gmra.mxu0 %v218
    %v268 = vpop.f32.mrf.mxu0
    %v269 = vadd.f32 %v184, %v268
    %v270 = vpop.f32.mrf.mxu0
    %271 = vdwg.mxu0
    %272 = vmatpush.bf16.msra.mxu0 0
    %273 = vmatpush.bf16.msra.mxu0 0
    %274 = vmatpush.bf16.msra.mxu0 0
    %275 = vmatpush.bf16.msra.mxu0 0
    %276 = vmatpush.bf16.msra.mxu0 0
    %277 = vmatpush.bf16.msra.mxu0 0
    %278 = vmatpush.bf16.msra.mxu0 0
    %279 = vmatpush.bf16.msra.mxu0 %v231
    %280 = vmatmul.bf16.gmra.mxu0 %v218
    %v281 = vpop.f32.mrf.mxu0
    %v282 = vadd.f32 %v197, %v281
    %v283 = vpop.f32.mrf.mxu0
    %284 = vdwg.mxu0
    %v285 = vld [vmem:[%s4] sm:$0xf]
    %v287 = vperm.slane %v285, 0
    %v288 = vperm.slane %v285, 1
    %v289 = vperm.slane %v285, 2
    %v290 = vperm.slane %v285, 3
    %v295 = vadd.f32 %v243, %v287
    %v296 = vadd.f32 %v256, %v288
    %v297 = vadd.f32 %v269, %v289
    %v298 = vadd.f32 %v282, %v290
    %v299 = vmax.f32 %v295, 0.0
    %v300 = vmax.f32 %v296, 0.0
    %v301 = vmax.f32 %v297, 0.0
    %v302 = vmax.f32 %v298, 0.0
    %v303 = vpack.c.bf16 %v300, %v299
    %v304 = vpack.c.bf16 %v302, %v301
    %v305 = vld [vmem:[#allocation4] sm:$0xff]
    %v306 = vld [vmem:[#allocation4 + $0x8] sm:$0xff]
    %v307 = vld [vmem:[#allocation4 + $0x10] sm:$0xff]
    %v308 = vld [vmem:[#allocation4 + $0x18] sm:$0xff]
    %v309 = vld [vmem:[#allocation4 + $0x20] sm:$0xff]
    %v310 = vld [vmem:[#allocation4 + $0x28] sm:$0xff]
    %v311 = vld [vmem:[#allocation4 + $0x30] sm:$0xff]
    %v312 = vld [vmem:[#allocation4 + $0x38] sm:$0xff]
    %v313 = vld [vmem:[#allocation4 + $0x40] sm:$0xff]
    %v314 = vld [vmem:[#allocation4 + $0x48] sm:$0xff]
    %v315 = vld [vmem:[#allocation4 + $0x50] sm:$0xff]
    %v316 = vld [vmem:[#allocation4 + $0x58] sm:$0xff]
    %v317 = vld [vmem:[#allocation4 + $0x60] sm:$0xff]
    %v318 = vld [vmem:[#allocation4 + $0x68] sm:$0xff]
    %v319 = vld [vmem:[#allocation4 + $0x70] sm:$0xff]
    %v320 = vld [vmem:[#allocation4 + $0x78] sm:$0xff]
    %v321 = vld [vmem:[#allocation4 + $0x80] sm:$0xff]
    %v322 = vld [vmem:[#allocation4 + $0x88] sm:$0xff]
    %v323 = vld [vmem:[#allocation4 + $0x90] sm:$0xff]
    %v324 = vld [vmem:[#allocation4 + $0x98] sm:$0xff]
    %v325 = vld [vmem:[#allocation4 + $0xa0] sm:$0xff]
    %v326 = vld [vmem:[#allocation4 + $0xa8] sm:$0xff]
    %v327 = vld [vmem:[#allocation4 + $0xb0] sm:$0xff]
    %v328 = vld [vmem:[#allocation4 + $0xb8] sm:$0xff]
    %v329 = vld [vmem:[#allocation4 + $0xc0] sm:$0xff]
    %v330 = vld [vmem:[#allocation4 + $0xc8] sm:$0xff]
    %v331 = vld [vmem:[#allocation4 + $0xd0] sm:$0xff]
    %v332 = vld [vmem:[#allocation4 + $0xd8] sm:$0xff]
    %v333 = vld [vmem:[#allocation4 + $0xe0] sm:$0xff]
    %v334 = vld [vmem:[#allocation4 + $0xe8] sm:$0xff]
    %v335 = vld [vmem:[#allocation4 + $0xf0] sm:$0xff]
    %v336 = vld [vmem:[#allocation4 + $0xf8] sm:$0xff]
    %v337 = vld [vmem:[%s6] sm:$0x3]
    %v339 = vperm.slane %v337, 0
    %v340 = vperm.slane %v337, 1
    %v344 = vunpack.c.l.b16 %v303
    %v345 = vunpack.c.h.b16 %v303
    %v346 = vpack.c.b16 %v344, %v344
    %v347 = vpack.c.b16 %v345, %v345
    %v382 = vunpack.c.l.b16 %v305
    %v383 = vunpack.c.h.b16 %v305
    %v384 = vunpack.c.l.b16 %v306
    %v385 = vunpack.c.h.b16 %v306
    %v386 = vunpack.c.l.b16 %v307
    %v387 = vunpack.c.h.b16 %v307
    %v388 = vunpack.c.l.b16 %v308
    %v389 = vunpack.c.h.b16 %v308
    %v390 = vunpack.c.l.b16 %v309
    %v391 = vunpack.c.h.b16 %v309
    %v392 = vunpack.c.l.b16 %v310
    %v393 = vunpack.c.h.b16 %v310
    %v394 = vunpack.c.l.b16 %v311
    %v395 = vunpack.c.h.b16 %v311
    %v396 = vunpack.c.l.b16 %v312
    %v397 = vunpack.c.h.b16 %v312
    %v398 = vunpack.c.l.b16 %v313
    %v399 = vunpack.c.h.b16 %v313
    %v400 = vunpack.c.l.b16 %v314
    %v401 = vunpack.c.h.b16 %v314
    %v402 = vunpack.c.l.b16 %v315
    %v403 = vunpack.c.h.b16 %v315
    %v404 = vunpack.c.l.b16 %v316
    %v405 = vunpack.c.h.b16 %v316
    %v406 = vunpack.c.l.b16 %v317
    %v407 = vunpack.c.h.b16 %v317
    %v408 = vunpack.c.l.b16 %v318
    %v409 = vunpack.c.h.b16 %v318
    %v410 = vunpack.c.l.b16 %v319
    %v411 = vunpack.c.h.b16 %v319
    %v412 = vunpack.c.l.b16 %v320
    %v413 = vunpack.c.h.b16 %v320
    %v414 = vunpack.c.l.b16 %v321
    %v415 = vunpack.c.h.b16 %v321
    %v416 = vunpack.c.l.b16 %v322
    %v417 = vunpack.c.h.b16 %v322
    %v418 = vunpack.c.l.b16 %v323
    %v419 = vunpack.c.h.b16 %v323
    %v420 = vunpack.c.l.b16 %v324
    %v421 = vunpack.c.h.b16 %v324
    %v422 = vunpack.c.l.b16 %v325
    %v423 = vunpack.c.h.b16 %v325
    %v424 = vunpack.c.l.b16 %v326
    %v425 = vunpack.c.h.b16 %v326
    %v426 = vunpack.c.l.b16 %v327
    %v427 = vunpack.c.h.b16 %v327
    %v428 = vunpack.c.l.b16 %v328
    %v429 = vunpack.c.h.b16 %v328
    %v430 = vunpack.c.l.b16 %v329
    %v431 = vunpack.c.h.b16 %v329
    %v432 = vunpack.c.l.b16 %v330
    %v433 = vunpack.c.h.b16 %v330
    %v434 = vunpack.c.l.b16 %v331
    %v435 = vunpack.c.h.b16 %v331
    %v436 = vunpack.c.l.b16 %v332
    %v437 = vunpack.c.h.b16 %v332
    %v438 = vunpack.c.l.b16 %v333
    %v439 = vunpack.c.h.b16 %v333
    %v440 = vunpack.c.l.b16 %v334
    %v441 = vunpack.c.h.b16 %v334
    %v442 = vunpack.c.l.b16 %v335
    %v443 = vunpack.c.h.b16 %v335
    %v444 = vunpack.c.l.b16 %v336
    %v445 = vunpack.c.h.b16 %v336
    %v446 = vpack.c.b16 %v384, %v382
    %v447 = vpack.c.b16 %v385, %v383
    %v448 = vpack.c.b16 %v388, %v386
    %v449 = vpack.c.b16 %v389, %v387
    %v450 = vpack.c.b16 %v392, %v390
    %v451 = vpack.c.b16 %v393, %v391
    %v452 = vpack.c.b16 %v396, %v394
    %v453 = vpack.c.b16 %v397, %v395
    %v454 = vpack.c.b16 %v400, %v398
    %v455 = vpack.c.b16 %v401, %v399
    %v456 = vpack.c.b16 %v404, %v402
    %v457 = vpack.c.b16 %v405, %v403
    %v458 = vpack.c.b16 %v408, %v406
    %v459 = vpack.c.b16 %v409, %v407
    %v460 = vpack.c.b16 %v412, %v410
    %v461 = vpack.c.b16 %v413, %v411
    %v462 = vpack.c.b16 %v416, %v414
    %v463 = vpack.c.b16 %v417, %v415
    %v464 = vpack.c.b16 %v420, %v418
    %v465 = vpack.c.b16 %v421, %v419
    %v466 = vpack.c.b16 %v424, %v422
    %v467 = vpack.c.b16 %v425, %v423
    %v468 = vpack.c.b16 %v428, %v426
    %v469 = vpack.c.b16 %v429, %v427
    %v470 = vpack.c.b16 %v432, %v430
    %v471 = vpack.c.b16 %v433, %v431
    %v472 = vpack.c.b16 %v436, %v434
    %v473 = vpack.c.b16 %v437, %v435
    %v474 = vpack.c.b16 %v440, %v438
    %v475 = vpack.c.b16 %v441, %v439
    %v476 = vpack.c.b16 %v444, %v442
    %v477 = vpack.c.b16 %v445, %v443
    %510 = vmatpush.bf16.msra.mxu0 %v460
    %511 = vmatpush.bf16.msra.mxu0 %v458
    %512 = vmatpush.bf16.msra.mxu0 %v456
    %513 = vmatpush.bf16.msra.mxu0 %v454
    %514 = vmatpush.bf16.msra.mxu0 %v452
    %515 = vmatpush.bf16.msra.mxu0 %v450
    %516 = vmatpush.bf16.msra.mxu0 %v448
    %517 = vmatpush.bf16.msra.mxu0 %v446
    %518 = vmatmul.bf16.gmra.mxu0 %v346
    %v519 = vpop.f32.mrf.mxu0
    %v520 = vadd.f32 %v339, %v519
    %v521 = vpop.f32.mrf.mxu0
    %522 = vdwg.mxu0
    %523 = vmatpush.bf16.msra.mxu0 %v476
    %524 = vmatpush.bf16.msra.mxu0 %v474
    %525 = vmatpush.bf16.msra.mxu0 %v472
    %526 = vmatpush.bf16.msra.mxu0 %v470
    %527 = vmatpush.bf16.msra.mxu0 %v468
    %528 = vmatpush.bf16.msra.mxu0 %v466
    %529 = vmatpush.bf16.msra.mxu0 %v464
    %530 = vmatpush.bf16.msra.mxu0 %v462
    %531 = vmatmul.bf16.gmra.mxu0 %v347
    %v532 = vpop.f32.mrf.mxu0
    %v533 = vadd.f32 %v520, %v532
    %v534 = vpop.f32.mrf.mxu0
    %535 = vdwg.mxu0
    %536 = vmatpush.bf16.msra.mxu0 %v461
    %537 = vmatpush.bf16.msra.mxu0 %v459
    %538 = vmatpush.bf16.msra.mxu0 %v457
    %539 = vmatpush.bf16.msra.mxu0 %v455
    %540 = vmatpush.bf16.msra.mxu0 %v453
    %541 = vmatpush.bf16.msra.mxu0 %v451
    %542 = vmatpush.bf16.msra.mxu0 %v449
    %543 = vmatpush.bf16.msra.mxu0 %v447
    %544 = vmatmul.bf16.gmra.mxu0 %v346
    %v545 = vpop.f32.mrf.mxu0
    %v546 = vadd.f32 %v340, %v545
    %v547 = vpop.f32.mrf.mxu0
    %548 = vdwg.mxu0
    %549 = vmatpush.bf16.msra.mxu0 %v477
    %550 = vmatpush.bf16.msra.mxu0 %v475
    %551 = vmatpush.bf16.msra.mxu0 %v473
    %552 = vmatpush.bf16.msra.mxu0 %v471
    %553 = vmatpush.bf16.msra.mxu0 %v469
    %554 = vmatpush.bf16.msra.mxu0 %v467
    %555 = vmatpush.bf16.msra.mxu0 %v465
    %556 = vmatpush.bf16.msra.mxu0 %v463
    %557 = vmatmul.bf16.gmra.mxu0 %v347
    %v558 = vpop.f32.mrf.mxu0
    %v559 = vadd.f32 %v546, %v558
    %v560 = vpop.f32.mrf.mxu0
    %561 = vdwg.mxu0
    %v562 = vmax.f32 %v533, 0.0
    %v563 = vmax.f32 %v559, 0.0
    %v564 = vpack.c.bf16 %v562, %v562
    %v565 = vpack.c.bf16 %v563, %v563
    %v566 = vld [vmem:[#allocation6] sm:$0xff]
    %v567 = vld [vmem:[#allocation6 + $0x8] sm:$0xff]
    %v568 = vld [vmem:[#allocation6 + $0x10] sm:$0xff]
    %v569 = vld [vmem:[#allocation6 + $0x18] sm:$0xff]
    %v570 = vld [vmem:[#allocation6 + $0x20] sm:$0xff]
    %v571 = vld [vmem:[#allocation6 + $0x28] sm:$0xff]
    %v572 = vld [vmem:[#allocation6 + $0x30] sm:$0xff]
    %v573 = vld [vmem:[#allocation6 + $0x38] sm:$0xff]
    %v574 = vld [vmem:[#allocation6 + $0x40] sm:$0xff]
    %v575 = vld [vmem:[#allocation6 + $0x48] sm:$0xff]
    %v576 = vld [vmem:[#allocation6 + $0x50] sm:$0xff]
    %v577 = vld [vmem:[#allocation6 + $0x58] sm:$0xff]
    %v578 = vld [vmem:[#allocation6 + $0x60] sm:$0xff]
    %v579 = vld [vmem:[#allocation6 + $0x68] sm:$0xff]
    %v580 = vld [vmem:[#allocation6 + $0x70] sm:$0xff]
    %v581 = vld [vmem:[#allocation6 + $0x78] sm:$0xff]
    %v582 = vld [vmem:[#allocation6 + $0x80] sm:$0xff]
    %v583 = vld [vmem:[#allocation6 + $0x88] sm:$0xff]
    %v584 = vld [vmem:[#allocation6 + $0x90] sm:$0xff]
    %v585 = vld [vmem:[#allocation6 + $0x98] sm:$0xff]
    %v586 = vld [vmem:[#allocation6 + $0xa0] sm:$0xff]
    %v587 = vld [vmem:[#allocation6 + $0xa8] sm:$0xff]
    %v588 = vld [vmem:[#allocation6 + $0xb0] sm:$0xff]
    %v589 = vld [vmem:[#allocation6 + $0xb8] sm:$0xff]
    %v590 = vld [vmem:[#allocation6 + $0xc0] sm:$0xff]
    %v591 = vld [vmem:[#allocation6 + $0xc8] sm:$0xff]
    %v592 = vld [vmem:[#allocation6 + $0xd0] sm:$0xff]
    %v593 = vld [vmem:[#allocation6 + $0xd8] sm:$0xff]
    %v594 = vld [vmem:[#allocation6 + $0xe0] sm:$0xff]
    %v595 = vld [vmem:[#allocation6 + $0xe8] sm:$0xff]
    %v596 = vld [vmem:[#allocation6 + $0xf0] sm:$0xff]
    %v597 = vld [vmem:[#allocation6 + $0xf8] sm:$0xff]
    %v598 = vld [vmem:[%s8] sm:$0x3]
    %v600 = vperm.slane %v598, 0
    %v601 = vperm.slane %v598, 1
    %v605 = vunpack.c.l.b16 %v304
    %v606 = vunpack.c.h.b16 %v304
    %v607 = vpack.c.b16 %v605, %v605
    %v608 = vpack.c.b16 %v606, %v606
    %v643 = vunpack.c.l.b16 %v566
    %v644 = vunpack.c.h.b16 %v566
    %v645 = vunpack.c.l.b16 %v567
    %v646 = vunpack.c.h.b16 %v567
    %v647 = vunpack.c.l.b16 %v568
    %v648 = vunpack.c.h.b16 %v568
    %v649 = vunpack.c.l.b16 %v569
    %v650 = vunpack.c.h.b16 %v569
    %v651 = vunpack.c.l.b16 %v570
    %v652 = vunpack.c.h.b16 %v570
    %v653 = vunpack.c.l.b16 %v571
    %v654 = vunpack.c.h.b16 %v571
    %v655 = vunpack.c.l.b16 %v572
    %v656 = vunpack.c.h.b16 %v572
    %v657 = vunpack.c.l.b16 %v573
    %v658 = vunpack.c.h.b16 %v573
    %v659 = vunpack.c.l.b16 %v574
    %v660 = vunpack.c.h.b16 %v574
    %v661 = vunpack.c.l.b16 %v575
    %v662 = vunpack.c.h.b16 %v575
    %v663 = vunpack.c.l.b16 %v576
    %v664 = vunpack.c.h.b16 %v576
    %v665 = vunpack.c.l.b16 %v577
    %v666 = vunpack.c.h.b16 %v577
    %v667 = vunpack.c.l.b16 %v578
    %v668 = vunpack.c.h.b16 %v578
    %v669 = vunpack.c.l.b16 %v579
    %v670 = vunpack.c.h.b16 %v579
    %v671 = vunpack.c.l.b16 %v580
    %v672 = vunpack.c.h.b16 %v580
    %v673 = vunpack.c.l.b16 %v581
    %v674 = vunpack.c.h.b16 %v581
    %v675 = vunpack.c.l.b16 %v582
    %v676 = vunpack.c.h.b16 %v582
    %v677 = vunpack.c.l.b16 %v583
    %v678 = vunpack.c.h.b16 %v583
    %v679 = vunpack.c.l.b16 %v584
    %v680 = vunpack.c.h.b16 %v584
    %v681 = vunpack.c.l.b16 %v585
    %v682 = vunpack.c.h.b16 %v585
    %v683 = vunpack.c.l.b16 %v586
    %v684 = vunpack.c.h.b16 %v586
    %v685 = vunpack.c.l.b16 %v587
    %v686 = vunpack.c.h.b16 %v587
    %v687 = vunpack.c.l.b16 %v588
    %v688 = vunpack.c.h.b16 %v588
    %v689 = vunpack.c.l.b16 %v589
    %v690 = vunpack.c.h.b16 %v589
    %v691 = vunpack.c.l.b16 %v590
    %v692 = vunpack.c.h.b16 %v590
    %v693 = vunpack.c.l.b16 %v591
    %v694 = vunpack.c.h.b16 %v591
    %v695 = vunpack.c.l.b16 %v592
    %v696 = vunpack.c.h.b16 %v592
    %v697 = vunpack.c.l.b16 %v593
    %v698 = vunpack.c.h.b16 %v593
    %v699 = vunpack.c.l.b16 %v594
    %v700 = vunpack.c.h.b16 %v594
    %v701 = vunpack.c.l.b16 %v595
    %v702 = vunpack.c.h.b16 %v595
    %v703 = vunpack.c.l.b16 %v596
    %v704 = vunpack.c.h.b16 %v596
    %v705 = vunpack.c.l.b16 %v597
    %v706 = vunpack.c.h.b16 %v597
    %v707 = vpack.c.b16 %v645, %v643
    %v708 = vpack.c.b16 %v646, %v644
    %v709 = vpack.c.b16 %v649, %v647
    %v710 = vpack.c.b16 %v650, %v648
    %v711 = vpack.c.b16 %v653, %v651
    %v712 = vpack.c.b16 %v654, %v652
    %v713 = vpack.c.b16 %v657, %v655
    %v714 = vpack.c.b16 %v658, %v656
    %v715 = vpack.c.b16 %v661, %v659
    %v716 = vpack.c.b16 %v662, %v660
    %v717 = vpack.c.b16 %v665, %v663
    %v718 = vpack.c.b16 %v666, %v664
    %v719 = vpack.c.b16 %v669, %v667
    %v720 = vpack.c.b16 %v670, %v668
    %v721 = vpack.c.b16 %v673, %v671
    %v722 = vpack.c.b16 %v674, %v672
    %v723 = vpack.c.b16 %v677, %v675
    %v724 = vpack.c.b16 %v678, %v676
    %v725 = vpack.c.b16 %v681, %v679
    %v726 = vpack.c.b16 %v682, %v680
    %v727 = vpack.c.b16 %v685, %v683
    %v728 = vpack.c.b16 %v686, %v684
    %v729 = vpack.c.b16 %v689, %v687
    %v730 = vpack.c.b16 %v690, %v688
    %v731 = vpack.c.b16 %v693, %v691
    %v732 = vpack.c.b16 %v694, %v692
    %v733 = vpack.c.b16 %v697, %v695
    %v734 = vpack.c.b16 %v698, %v696
    %v735 = vpack.c.b16 %v701, %v699
    %v736 = vpack.c.b16 %v702, %v700
    %v737 = vpack.c.b16 %v705, %v703
    %v738 = vpack.c.b16 %v706, %v704
    %771 = vmatpush.bf16.msra.mxu0 %v721
    %772 = vmatpush.bf16.msra.mxu0 %v719
    %773 = vmatpush.bf16.msra.mxu0 %v717
    %774 = vmatpush.bf16.msra.mxu0 %v715
    %775 = vmatpush.bf16.msra.mxu0 %v713
    %776 = vmatpush.bf16.msra.mxu0 %v711
    %777 = vmatpush.bf16.msra.mxu0 %v709
    %778 = vmatpush.bf16.msra.mxu0 %v707
    %779 = vmatmul.bf16.gmra.mxu0 %v607
    %v780 = vpop.f32.mrf.mxu0
    %v781 = vadd.f32 %v600, %v780
    %v782 = vpop.f32.mrf.mxu0
    %783 = vdwg.mxu0
    %784 = vmatpush.bf16.msra.mxu0 %v737
    %785 = vmatpush.bf16.msra.mxu0 %v735
    %786 = vmatpush.bf16.msra.mxu0 %v733
    %787 = vmatpush.bf16.msra.mxu0 %v731
    %788 = vmatpush.bf16.msra.mxu0 %v729
    %789 = vmatpush.bf16.msra.mxu0 %v727
    %790 = vmatpush.bf16.msra.mxu0 %v725
    %791 = vmatpush.bf16.msra.mxu0 %v723
    %792 = vmatmul.bf16.gmra.mxu0 %v608
    %v793 = vpop.f32.mrf.mxu0
    %v794 = vadd.f32 %v781, %v793
    %v795 = vpop.f32.mrf.mxu0
    %796 = vdwg.mxu0
    %797 = vmatpush.bf16.msra.mxu0 %v722
    %798 = vmatpush.bf16.msra.mxu0 %v720
    %799 = vmatpush.bf16.msra.mxu0 %v718
    %800 = vmatpush.bf16.msra.mxu0 %v716
    %801 = vmatpush.bf16.msra.mxu0 %v714
    %802 = vmatpush.bf16.msra.mxu0 %v712
    %803 = vmatpush.bf16.msra.mxu0 %v710
    %804 = vmatpush.bf16.msra.mxu0 %v708
    %805 = vmatmul.bf16.gmra.mxu0 %v607
    %v806 = vpop.f32.mrf.mxu0
    %v807 = vadd.f32 %v601, %v806
    %v808 = vpop.f32.mrf.mxu0
    %809 = vdwg.mxu0
    %810 = vmatpush.bf16.msra.mxu0 %v738
    %811 = vmatpush.bf16.msra.mxu0 %v736
    %812 = vmatpush.bf16.msra.mxu0 %v734
    %813 = vmatpush.bf16.msra.mxu0 %v732
    %814 = vmatpush.bf16.msra.mxu0 %v730
    %815 = vmatpush.bf16.msra.mxu0 %v728
    %816 = vmatpush.bf16.msra.mxu0 %v726
    %817 = vmatpush.bf16.msra.mxu0 %v724
    %818 = vmatmul.bf16.gmra.mxu0 %v608
    %v819 = vpop.f32.mrf.mxu0
    %v820 = vadd.f32 %v807, %v819
    %v821 = vpop.f32.mrf.mxu0
    %822 = vdwg.mxu0
    %v823 = vmax.f32 %v794, 0.0
    %v824 = vmax.f32 %v820, 0.0
    %v825 = vpack.c.bf16 %v823, %v823
    %v826 = vpack.c.bf16 %v824, %v824
    %v827 = vld [vmem:[#allocation7] sm:$0xf]
    %v828 = vld [vmem:[#allocation7 + $0x4] sm:$0xf]
    %v829 = vld [vmem:[#allocation7 + $0x8] sm:$0xf]
    %v830 = vld [vmem:[#allocation7 + $0xc] sm:$0xf]
    %v831 = vld [vmem:[#allocation7 + $0x10] sm:$0xf]
    %v832 = vld [vmem:[#allocation7 + $0x14] sm:$0xf]
    %v833 = vld [vmem:[#allocation7 + $0x18] sm:$0xf]
    %v834 = vld [vmem:[#allocation7 + $0x1c] sm:$0xf]
    %v835 = vld [vmem:[#allocation7 + $0x20] sm:$0xf]
    %v836 = vld [vmem:[#allocation7 + $0x24] sm:$0xf]
    %v837 = vld [vmem:[#allocation7 + $0x28] sm:$0xf]
    %v838 = vld [vmem:[#allocation7 + $0x2c] sm:$0xf]
    %v839 = vld [vmem:[#allocation7 + $0x30] sm:$0xf]
    %v840 = vld [vmem:[#allocation7 + $0x34] sm:$0xf]
    %v841 = vld [vmem:[#allocation7 + $0x38] sm:$0xf]
    %v842 = vld [vmem:[#allocation7 + $0x3c] sm:$0xf]
    %v843 = vld [vmem:[#allocation7 + $0x40] sm:$0xf]
    %v844 = vld [vmem:[#allocation7 + $0x44] sm:$0xf]
    %v845 = vld [vmem:[#allocation7 + $0x48] sm:$0xf]
    %v846 = vld [vmem:[#allocation7 + $0x4c] sm:$0xf]
    %v847 = vld [vmem:[#allocation7 + $0x50] sm:$0xf]
    %v848 = vld [vmem:[#allocation7 + $0x54] sm:$0xf]
    %v849 = vld [vmem:[#allocation7 + $0x58] sm:$0xf]
    %v850 = vld [vmem:[#allocation7 + $0x5c] sm:$0xf]
    %v851 = vld [vmem:[#allocation7 + $0x60] sm:$0xf]
    %v852 = vld [vmem:[#allocation7 + $0x64] sm:$0xf]
    %v853 = vld [vmem:[#allocation7 + $0x68] sm:$0xf]
    %v854 = vld [vmem:[#allocation7 + $0x6c] sm:$0xf]
    %v855 = vld [vmem:[#allocation7 + $0x70] sm:$0xf]
    %v856 = vld [vmem:[#allocation7 + $0x74] sm:$0xf]
    %v857 = vld [vmem:[#allocation7 + $0x78] sm:$0xf]
    %v858 = vld [vmem:[#allocation7 + $0x7c] sm:$0xf]
    %v859 = vld [vmem:[#allocation9] sm:$0xf]
    %v860 = vld [vmem:[#allocation9 + $0x4] sm:$0xf]
    %v861 = vld [vmem:[#allocation9 + $0x8] sm:$0xf]
    %v862 = vld [vmem:[#allocation9 + $0xc] sm:$0xf]
    %v863 = vld [vmem:[#allocation9 + $0x10] sm:$0xf]
    %v864 = vld [vmem:[#allocation9 + $0x14] sm:$0xf]
    %v865 = vld [vmem:[#allocation9 + $0x18] sm:$0xf]
    %v866 = vld [vmem:[#allocation9 + $0x1c] sm:$0xf]
    %v867 = vld [vmem:[#allocation9 + $0x20] sm:$0xf]
    %v868 = vld [vmem:[#allocation9 + $0x24] sm:$0xf]
    %v869 = vld [vmem:[#allocation9 + $0x28] sm:$0xf]
    %v870 = vld [vmem:[#allocation9 + $0x2c] sm:$0xf]
    %v871 = vld [vmem:[#allocation9 + $0x30] sm:$0xf]
    %v872 = vld [vmem:[#allocation9 + $0x34] sm:$0xf]
    %v873 = vld [vmem:[#allocation9 + $0x38] sm:$0xf]
    %v874 = vld [vmem:[#allocation9 + $0x3c] sm:$0xf]
    %v875 = vld [vmem:[#allocation9 + $0x40] sm:$0xf]
    %v876 = vld [vmem:[#allocation9 + $0x44] sm:$0xf]
    %v877 = vld [vmem:[#allocation9 + $0x48] sm:$0xf]
    %v878 = vld [vmem:[#allocation9 + $0x4c] sm:$0xf]
    %v879 = vld [vmem:[#allocation9 + $0x50] sm:$0xf]
    %v880 = vld [vmem:[#allocation9 + $0x54] sm:$0xf]
    %v881 = vld [vmem:[#allocation9 + $0x58] sm:$0xf]
    %v882 = vld [vmem:[#allocation9 + $0x5c] sm:$0xf]
    %v883 = vld [vmem:[#allocation9 + $0x60] sm:$0xf]
    %v884 = vld [vmem:[#allocation9 + $0x64] sm:$0xf]
    %v885 = vld [vmem:[#allocation9 + $0x68] sm:$0xf]
    %v886 = vld [vmem:[#allocation9 + $0x6c] sm:$0xf]
    %v887 = vld [vmem:[#allocation9 + $0x70] sm:$0xf]
    %v888 = vld [vmem:[#allocation9 + $0x74] sm:$0xf]
    %v889 = vld [vmem:[#allocation9 + $0x78] sm:$0xf]
    %v890 = vld [vmem:[#allocation9 + $0x7c] sm:$0xf]
    %v923 = vunpack.c.l.b16 %v859
    %v924 = vunpack.c.l.b16 %v860
    %v925 = vunpack.c.l.b16 %v861
    %v926 = vunpack.c.l.b16 %v862
    %v927 = vunpack.c.l.b16 %v863
    %v928 = vunpack.c.l.b16 %v864
    %v929 = vunpack.c.l.b16 %v865
    %v930 = vunpack.c.l.b16 %v866
    %v931 = vunpack.c.l.b16 %v867
    %v932 = vunpack.c.l.b16 %v868
    %v933 = vunpack.c.l.b16 %v869
    %v934 = vunpack.c.l.b16 %v870
    %v935 = vunpack.c.l.b16 %v871
    %v936 = vunpack.c.l.b16 %v872
    %v937 = vunpack.c.l.b16 %v873
    %v938 = vunpack.c.l.b16 %v874
    %v939 = vunpack.c.l.b16 %v875
    %v940 = vunpack.c.l.b16 %v876
    %v941 = vunpack.c.l.b16 %v877
    %v942 = vunpack.c.l.b16 %v878
    %v943 = vunpack.c.l.b16 %v879
    %v944 = vunpack.c.l.b16 %v880
    %v945 = vunpack.c.l.b16 %v881
    %v946 = vunpack.c.l.b16 %v882
    %v947 = vunpack.c.l.b16 %v883
    %v948 = vunpack.c.l.b16 %v884
    %v949 = vunpack.c.l.b16 %v885
    %v950 = vunpack.c.l.b16 %v886
    %v951 = vunpack.c.l.b16 %v887
    %v952 = vunpack.c.l.b16 %v888
    %v953 = vunpack.c.l.b16 %v889
    %v954 = vunpack.c.l.b16 %v890
    %v955 = vpack.c.b16 %v924, %v923
    %v956 = vpack.c.b16 %v926, %v925
    %v957 = vpack.c.b16 %v928, %v927
    %v958 = vpack.c.b16 %v930, %v929
    %v959 = vpack.c.b16 %v932, %v931
    %v960 = vpack.c.b16 %v934, %v933
    %v961 = vpack.c.b16 %v936, %v935
    %v962 = vpack.c.b16 %v938, %v937
    %v963 = vpack.c.b16 %v940, %v939
    %v964 = vpack.c.b16 %v942, %v941
    %v965 = vpack.c.b16 %v944, %v943
    %v966 = vpack.c.b16 %v946, %v945
    %v967 = vpack.c.b16 %v948, %v947
    %v968 = vpack.c.b16 %v950, %v949
    %v969 = vpack.c.b16 %v952, %v951
    %v970 = vpack.c.b16 %v954, %v953
    %987 = vmatpush.bf16.msra.mxu0 %v962
    %988 = vmatpush.bf16.msra.mxu0 %v961
    %989 = vmatpush.bf16.msra.mxu0 %v960
    %990 = vmatpush.bf16.msra.mxu0 %v959
    %991 = vmatpush.bf16.msra.mxu0 %v958
    %992 = vmatpush.bf16.msra.mxu0 %v957
    %993 = vmatpush.bf16.msra.mxu0 %v956
    %994 = vmatpush.bf16.msra.mxu0 %v955
    %995 = vmatmul.bf16.gmra.mxu0 %v825
    %v996 = vpop.f32.mrf.mxu0
    %v997 = vadd.f32 0.0, %v996
    %v998 = vpop.f32.mrf.mxu0
    %999 = vdwg.mxu0
    %1000 = vmatpush.bf16.msra.mxu0 %v970
    %1001 = vmatpush.bf16.msra.mxu0 %v969
    %1002 = vmatpush.bf16.msra.mxu0 %v968
    %1003 = vmatpush.bf16.msra.mxu0 %v967
    %1004 = vmatpush.bf16.msra.mxu0 %v966
    %1005 = vmatpush.bf16.msra.mxu0 %v965
    %1006 = vmatpush.bf16.msra.mxu0 %v964
    %1007 = vmatpush.bf16.msra.mxu0 %v963
    %1008 = vmatmul.bf16.gmra.mxu0 %v826
    %v1009 = vpop.f32.mrf.mxu0
    %v1010 = vadd.f32 %v997, %v1009
    %v1011 = vpop.f32.mrf.mxu0
    %1012 = vdwg.mxu0
    %v1045 = vunpack.c.l.b16 %v827
    %v1046 = vunpack.c.l.b16 %v828
    %v1047 = vunpack.c.l.b16 %v829
    %v1048 = vunpack.c.l.b16 %v830
    %v1049 = vunpack.c.l.b16 %v831
    %v1050 = vunpack.c.l.b16 %v832
    %v1051 = vunpack.c.l.b16 %v833
    %v1052 = vunpack.c.l.b16 %v834
    %v1053 = vunpack.c.l.b16 %v835
    %v1054 = vunpack.c.l.b16 %v836
    %v1055 = vunpack.c.l.b16 %v837
    %v1056 = vunpack.c.l.b16 %v838
    %v1057 = vunpack.c.l.b16 %v839
    %v1058 = vunpack.c.l.b16 %v840
    %v1059 = vunpack.c.l.b16 %v841
    %v1060 = vunpack.c.l.b16 %v842
    %v1061 = vunpack.c.l.b16 %v843
    %v1062 = vunpack.c.l.b16 %v844
    %v1063 = vunpack.c.l.b16 %v845
    %v1064 = vunpack.c.l.b16 %v846
    %v1065 = vunpack.c.l.b16 %v847
    %v1066 = vunpack.c.l.b16 %v848
    %v1067 = vunpack.c.l.b16 %v849
    %v1068 = vunpack.c.l.b16 %v850
    %v1069 = vunpack.c.l.b16 %v851
    %v1070 = vunpack.c.l.b16 %v852
    %v1071 = vunpack.c.l.b16 %v853
    %v1072 = vunpack.c.l.b16 %v854
    %v1073 = vunpack.c.l.b16 %v855
    %v1074 = vunpack.c.l.b16 %v856
    %v1075 = vunpack.c.l.b16 %v857
    %v1076 = vunpack.c.l.b16 %v858
    %v1077 = vpack.c.b16 %v1046, %v1045
    %v1078 = vpack.c.b16 %v1048, %v1047
    %v1079 = vpack.c.b16 %v1050, %v1049
    %v1080 = vpack.c.b16 %v1052, %v1051
    %v1081 = vpack.c.b16 %v1054, %v1053
    %v1082 = vpack.c.b16 %v1056, %v1055
    %v1083 = vpack.c.b16 %v1058, %v1057
    %v1084 = vpack.c.b16 %v1060, %v1059
    %v1085 = vpack.c.b16 %v1062, %v1061
    %v1086 = vpack.c.b16 %v1064, %v1063
    %v1087 = vpack.c.b16 %v1066, %v1065
    %v1088 = vpack.c.b16 %v1068, %v1067
    %v1089 = vpack.c.b16 %v1070, %v1069
    %v1090 = vpack.c.b16 %v1072, %v1071
    %v1091 = vpack.c.b16 %v1074, %v1073
    %v1092 = vpack.c.b16 %v1076, %v1075
    %1109 = vmatpush.bf16.msra.mxu0 %v1084
    %1110 = vmatpush.bf16.msra.mxu0 %v1083
    %1111 = vmatpush.bf16.msra.mxu0 %v1082
    %1112 = vmatpush.bf16.msra.mxu0 %v1081
    %1113 = vmatpush.bf16.msra.mxu0 %v1080
    %1114 = vmatpush.bf16.msra.mxu0 %v1079
    %1115 = vmatpush.bf16.msra.mxu0 %v1078
    %1116 = vmatpush.bf16.msra.mxu0 %v1077
    %1117 = vmatmul.bf16.gmra.mxu0 %v564
    %v1118 = vpop.f32.mrf.mxu0
    %v1119 = vadd.f32 %v1010, %v1118
    %v1120 = vpop.f32.mrf.mxu0
    %1121 = vdwg.mxu0
    %1122 = vmatpush.bf16.msra.mxu0 %v1092
    %1123 = vmatpush.bf16.msra.mxu0 %v1091
    %1124 = vmatpush.bf16.msra.mxu0 %v1090
    %1125 = vmatpush.bf16.msra.mxu0 %v1089
    %1126 = vmatpush.bf16.msra.mxu0 %v1088
    %1127 = vmatpush.bf16.msra.mxu0 %v1087
    %1128 = vmatpush.bf16.msra.mxu0 %v1086
    %1129 = vmatpush.bf16.msra.mxu0 %v1085
    %1130 = vmatmul.bf16.gmra.mxu0 %v565
    %v1131 = vpop.f32.mrf.mxu0
    %v1132 = vadd.f32 %v1119, %v1131
    %v1133 = vpop.f32.mrf.mxu0
    %1134 = vdwg.mxu0
    %v1135 = vld [vmem:[%s11] sm:$0x1]
    %v1137 = vperm.slane %v1135, 0
    %v1139 = vadd.f32 %v1132, %v1137
    %1140 = vst [vmem:[%s12] sm:$0xff] %v1139
    // Predicated region
    $region70: #{critic_forward.1} parent=1 // pred_check
      _
    $region71: #{critic_forward.1} parent=1 // pred_check_branch
      %1142 = sbr.rel (0) target = $region73
    $region72: #{critic_forward.1} parent=1 // pred_region
      _
    $region73: #{critic_forward.1} parent=1 // pred_fallthru
      _
    // Predicated region
    $region74: #{critic_forward.1} parent=1 // pred_check
      _
    $region75: #{critic_forward.1} parent=1 // pred_check_branch
      %1144 = sbr.rel (0) target = $region77
    $region76: #{critic_forward.1} parent=1 // pred_region
      _
    $region77: #{critic_forward.1} parent=1 // pred_fallthru
      _
    %1145 = vsyncpa [#allocation3], 1
    %1146 = vsyncpa [#allocation5], 1
    %1147 = vsyncpa [#allocation8], 1

</llo_original>
